<compile_context>
chip_gen: v5e
topology: v5e:2x2
jax: 0.10.0
libtpu: 0.0.40
codegen_flags: <defaults>
</compile_context>

<pallas_src>
import math
from functools import partial

import jax
import jax.numpy as jnp
from jax.experimental import pallas as pl
from jax.experimental.pallas import tpu as pltpu


# ---------------------------------------------------------------------------
# helpers
# ---------------------------------------------------------------------------
def _pick_tile(dim, target, align):
    """Largest tile <= target that divides dim and is `align`-aligned (or the full dim)."""
    if dim <= target:
        return dim
    t = (target // align) * align
    while t >= align:
        if dim % t == 0:
            return t
        t -= align
    return dim


def _vmem_limit(*block_elems_f32):
    """Explicit scoped-VMEM budget sized to the chosen tiles (safe on v5e/v6e/v7x)."""
    need = 4 * sum(block_elems_f32) * 4          # double-buffered tiles + headroom (f32)
    return int(min(64 * 2**20, max(32 * 2**20, need)))


# ---------------------------------------------------------------------------
# 1) LayerNormalization kernel (torch semantics: unbiased std, eps on std)
# ---------------------------------------------------------------------------
def _layernorm_kernel(eps, d, x_ref, a_ref, b_ref, o_ref):
    x = x_ref[...].astype(jnp.float32)
    mean = jnp.mean(x, axis=-1, keepdims=True)
    diff = x - mean
    # torch.Tensor.std() is the unbiased estimator: divide by (d - 1)
    std = jnp.sqrt(jnp.sum(diff * diff, axis=-1, keepdims=True) / (d - 1))
    out = a_ref[...] * diff / (std + eps) + b_ref[...]
    o_ref[...] = out.astype(o_ref.dtype)


def layernorm(x, alpha, bias, *, eps=1e-6, tm_target=256):
    B, S, D = x.shape
    M = B * S
    x2 = x.reshape(M, D)
    tm = _pick_tile(M, tm_target, 8)
    out = pl.pallas_call(
        partial(_layernorm_kernel, eps, D),
        out_shape=jax.ShapeDtypeStruct((M, D), x.dtype),
        grid_spec=pltpu.PrefetchScalarGridSpec(
            num_scalar_prefetch=0,
            grid=(M // tm,),
            in_specs=[
                pl.BlockSpec((tm, D), lambda i: (i, 0)),
                pl.BlockSpec((1, 1), lambda i: (0, 0)),
                pl.BlockSpec((1, 1), lambda i: (0, 0)),
            ],
            out_specs=pl.BlockSpec((tm, D), lambda i: (i, 0)),
        ),
        compiler_params=pltpu.CompilerParams(
            dimension_semantics=("parallel",),
            vmem_limit_bytes=_vmem_limit(3 * tm * D),
        ),
    )(x2, alpha.reshape(1, 1).astype(x.dtype), bias.reshape(1, 1).astype(x.dtype))
    return out.reshape(B, S, D)


# ---------------------------------------------------------------------------
# 2) Tiled matmul kernel with fused bias / ReLU / residual-add
# ---------------------------------------------------------------------------
def _linear_kernel(has_bias, has_residual, activation, *refs):
    x_ref, w_ref = refs[0], refs[1]
    idx = 2
    b_ref = r_ref = None
    if has_bias:
        b_ref = refs[idx]; idx += 1
    if has_residual:
        r_ref = refs[idx]; idx += 1
    o_ref, acc_ref = refs[idx], refs[idx + 1]

    @pl.when(pl.program_id(2) == 0)
    def _():
        acc_ref[...] = jnp.zeros_like(acc_ref)

    acc_ref[...] += jnp.dot(x_ref[...], w_ref[...],
                            preferred_element_type=jnp.float32)

    @pl.when(pl.program_id(2) == pl.num_programs(2) - 1)
    def _():
        acc = acc_ref[...]
        if has_bias:
            acc = acc + b_ref[...].astype(jnp.float32)
        if activation == "relu":
            acc = jnp.maximum(acc, 0.0)
        if has_residual:
            acc = acc + r_ref[...].astype(jnp.float32)
        o_ref[...] = acc.astype(o_ref.dtype)


def linear(x, w, *, bias=None, residual=None, activation=None,
           tm_target=256, tn_target=256, tk_target=512):
    """out = act(x @ w + bias) + residual, MXU matmul with f32 accumulation."""
    M, K = x.shape
    K2, N = w.shape
    assert K == K2
    tm = _pick_tile(M, tm_target, 8)     # large row tiles (clamped to M)
    tn = _pick_tile(N, tn_target, 128)   # lane-dense output tiles
    tk = _pick_tile(K, tk_target, 128)

    in_specs = [
        pl.BlockSpec((tm, tk), lambda i, j, k: (i, k)),
        pl.BlockSpec((tk, tn), lambda i, j, k: (k, j)),
    ]
    args = [x, w]
    if bias is not None:
        in_specs.append(pl.BlockSpec((1, tn), lambda i, j, k: (0, j)))
        args.append(bias.reshape(1, N).astype(x.dtype))
    if residual is not None:
        in_specs.append(pl.BlockSpec((tm, tn), lambda i, j, k: (i, j)))
        args.append(residual)

    cost = pl.CostEstimate(
        flops=int(2 * M * K * N),
        transcendentals=0,
        bytes_accessed=int(4 * (M * K + K * N + M * N
                                + (N if bias is not None else 0)
                                + (M * N if residual is not None else 0))),
    )

    return pl.pallas_call(
        partial(_linear_kernel, bias is not None, residual is not None, activation),
        out_shape=jax.ShapeDtypeStruct((M, N), x.dtype),
        grid_spec=pltpu.PrefetchScalarGridSpec(
            num_scalar_prefetch=0,
            grid=(M // tm, N // tn, K // tk),          # reduction axis innermost
            in_specs=in_specs,
            out_specs=pl.BlockSpec((tm, tn), lambda i, j, k: (i, j)),
            scratch_shapes=[pltpu.VMEM((tm, tn), jnp.float32)],
        ),
        compiler_params=pltpu.CompilerParams(
            dimension_semantics=("parallel", "parallel", "arbitrary"),
            vmem_limit_bytes=_vmem_limit(tm * tk, tk * tn, 2 * tm * tn),
        ),
        cost_estimate=cost,
    )(*args)


# ---------------------------------------------------------------------------
# 3) Masked scaled-dot-product attention kernel (one (batch, head) per program)
# ---------------------------------------------------------------------------
def _attention_kernel(scale, q_ref, k_ref, v_ref, m_ref, o_ref):
    q = q_ref[0].astype(jnp.float32)                  # (Sq, dh)
    k = k_ref[0].astype(jnp.float32)                  # (Skv, dh)
    v = v_ref[0].astype(jnp.float32)                  # (Skv, dh)
    s = jax.lax.dot_general(q, k, (((1,), (1,)), ((), ())),
                            preferred_element_type=jnp.float32) * scale
    s = jnp.where(m_ref[0] == 0, -1e9, s)             # masked_fill(mask == 0, -1e9)
    m = jnp.max(s, axis=-1, keepdims=True)
    e = jnp.exp(s - m)
    denom = jnp.sum(e, axis=-1, keepdims=True)
    p = e * pl.reciprocal(denom, approx=True)         # EUP reciprocal: separate slot
    ctx = jnp.dot(p, v, preferred_element_type=jnp.float32)
    o_ref[0] = ctx.astype(o_ref.dtype)


def attention(q, k, v, mask, num_heads):
    """q,k,v: [B*H, S, dh]; mask: [B, Sq, Skv] (1 = keep, 0 = mask out)."""
    BH, Sq, dh = q.shape
    Skv = k.shape[1]
    H = num_heads
    scale = 1.0 / math.sqrt(dh)
    cost = pl.CostEstimate(
        flops=int(4 * BH * Sq * Skv * dh),
        transcendentals=int(BH * Sq * Skv),
        bytes_accessed=int(4 * (q.size + k.size + v.size + BH * Sq * dh + mask.size)),
    )
    return pl.pallas_call(
        partial(_attention_kernel, scale),
        out_shape=jax.ShapeDtypeStruct((BH, Sq, dh), q.dtype),
        grid_spec=pltpu.PrefetchScalarGridSpec(
            num_scalar_prefetch=0,
            grid=(BH,),
            in_specs=[
                pl.BlockSpec((1, Sq, dh), lambda i: (i, 0, 0)),
                pl.BlockSpec((1, Skv, dh), lambda i: (i, 0, 0)),
                pl.BlockSpec((1, Skv, dh), lambda i: (i, 0, 0)),
                pl.BlockSpec((1, Sq, Skv), lambda i: (i // H, 0, 0)),   # mask per batch
            ],
            out_specs=pl.BlockSpec((1, Sq, dh), lambda i: (i, 0, 0)),
        ),
        compiler_params=pltpu.CompilerParams(
            dimension_semantics=("parallel",),
            vmem_limit_bytes=_vmem_limit(Sq * dh, 2 * Skv * dh, Sq * Skv, Sq * dh),
        ),
        cost_estimate=cost,
    )(q, k, v, mask)


# ---------------------------------------------------------------------------
# DecoderBlock forward (composition of the kernels above)
# ---------------------------------------------------------------------------
def _mha_block(q_in, kv_in, mask, wq, wk, wv, wo, x_resid, num_heads):
    B, Sq, D = q_in.shape
    Skv = kv_in.shape[1]
    H = num_heads
    dh = D // H
    Mq, Mkv = B * Sq, B * Skv

    q = linear(q_in.reshape(Mq, D), wq)
    k = linear(kv_in.reshape(Mkv, D), wk)
    v = linear(kv_in.reshape(Mkv, D), wv)

    def to_heads(t, S):   # [B*S, D] -> [B*H, S, dh]  (wrapper-side layout plumbing)
        return t.reshape(B, S, H, dh).transpose(0, 2, 1, 3).reshape(B * H, S, dh)

    ctx = attention(to_heads(q, Sq), to_heads(k, Skv), to_heads(v, Skv), mask, H)
    ctx = ctx.reshape(B, H, Sq, dh).transpose(0, 2, 1, 3).reshape(Mq, D)

    # output projection fused with the residual add: x + wo(ctx)
    return linear(ctx, wo, residual=x_resid.reshape(Mq, D)).reshape(B, Sq, D)


def decoder_block(x, encoder_output, src_mask, tgt_mask, params, *, num_heads):
    """Forward pass of the PyTorch DecoderBlock (eval mode)."""
    # TODO(synk): nn.Dropout is identity at inference; no RNG dropout kernel emitted.
    B, Sq, D = x.shape
    p = params

    # 1) self-attention sublayer (pre-norm residual; q = k = v = norm(x))
    y = layernorm(x, p["ln0_a"], p["ln0_b"])
    x = _mha_block(y, y, tgt_mask, p["wq0"], p["wk0"], p["wv0"], p["wo0"], x, num_heads)

    # 2) cross-attention sublayer (query = norm(x); key/value = raw encoder output)
    y = layernorm(x, p["ln1_a"], p["ln1_b"])
    x = _mha_block(y, encoder_output, src_mask,
                   p["wq1"], p["wk1"], p["wv1"], p["wo1"], x, num_heads)

    # 3) feed-forward sublayer: x + fc2(relu(fc1(norm(x)))), bias/ReLU/residual fused
    y = layernorm(x, p["ln2_a"], p["ln2_b"])
    M = B * Sq
    h = linear(y.reshape(M, D), p["w1"], bias=p["b1"], activation="relu")
    x = linear(h, p["w2"], bias=p["b2"], residual=x.reshape(M, D)).reshape(B, Sq, D)
    return x


# ---------------------------------------------------------------------------
# Pure-JAX reference (mirrors the PyTorch module math exactly)
# ---------------------------------------------------------------------------
def reference_decoder_block(x, enc, src_mask, tgt_mask, p, *, num_heads, eps=1e-6):
    def ln(z, a, b):
        mean = jnp.mean(z, axis=-1, keepdims=True)
        std = jnp.std(z, axis=-1, keepdims=True, ddof=1)     # torch std: unbiased
        return a * (z - mean) / (std + eps) + b

    def mha(q_in, kv_in, mask, wq, wk, wv, wo):
        B, Sq, D = q_in.shape
        Skv = kv_in.shape[1]
        dh = D // num_heads
        q = (q_in @ wq).reshape(B, Sq, num_heads, dh).transpose(0, 2, 1, 3)
        k = (kv_in @ wk).reshape(B, Skv, num_heads, dh).transpose(0, 2, 1, 3)
        v = (kv_in @ wv).reshape(B, Skv, num_heads, dh).transpose(0, 2, 1, 3)
        s = jnp.einsum("bhqd,bhkd->bhqk", q, k) / math.sqrt(dh)
        s = jnp.where(mask[:, None, :, :] == 0, -1e9, s)
        a = jax.nn.softmax(s, axis=-1)
        ctx = jnp.einsum("bhqk,bhkd->bhqd", a, v)
        ctx = ctx.transpose(0, 2, 1, 3).reshape(B, Sq, D)
        return ctx @ wo

    y = ln(x, p["ln0_a"], p["ln0_b"])
    x = x + mha(y, y, tgt_mask, p["wq0"], p["wk0"], p["wv0"], p["wo0"])
    y = ln(x, p["ln1_a"], p["ln1_b"])
    x = x + mha(y, enc, src_mask, p["wq1"], p["wk1"], p["wv1"], p["wo1"])
    y = ln(x, p["ln2_a"], p["ln2_b"])
    x = x + (jnp.maximum(y @ p["w1"] + p["b1"], 0.0) @ p["w2"] + p["b2"])
    return x


if __name__ == "__main__":
    # Small shapes consistent with the module: batch=2, seq=8, d_model=32,
    # num_heads=8 (d_head=4), d_ff=64, encoder seq=8.
    B, S_TGT, S_SRC, D, H, D_FF = 2, 8, 8, 32, 8, 64

    key = jax.random.PRNGKey(0)
    ks = jax.random.split(key, 16)

    def uinit(k, shape, fan_in):
        b = 1.0 / math.sqrt(fan_in)
        return jax.random.uniform(k, shape, jnp.float32, -b, b)

    params = {
        "ln0_a": jnp.ones((1,), jnp.float32), "ln0_b": jnp.zeros((1,), jnp.float32),
        "ln1_a": jnp.ones((1,), jnp.float32), "ln1_b": jnp.zeros((1,), jnp.float32),
        "ln2_a": jnp.ones((1,), jnp.float32), "ln2_b": jnp.zeros((1,), jnp.float32),
        "wq0": uinit(ks[0], (D, D), D), "wk0": uinit(ks[1], (D, D), D),
        "wv0": uinit(ks[2], (D, D), D), "wo0": uinit(ks[3], (D, D), D),
        "wq1": uinit(ks[4], (D, D), D), "wk1": uinit(ks[5], (D, D), D),
        "wv1": uinit(ks[6], (D, D), D), "wo1": uinit(ks[7], (D, D), D),
        "w1": uinit(ks[8], (D, D_FF), D), "b1": uinit(ks[9], (D_FF,), D),
        "w2": uinit(ks[10], (D_FF, D), D_FF), "b2": uinit(ks[11], (D,), D_FF),
    }
    x = jax.random.normal(ks[12], (B, S_TGT, D), jnp.float32)
    enc = jax.random.normal(ks[13], (B, S_SRC, D), jnp.float32)
    tgt_mask = jnp.tile(jnp.tril(jnp.ones((S_TGT, S_TGT), jnp.int32))[None], (B, 1, 1))
    src_mask = jnp.ones((B, S_TGT, S_SRC), jnp.int32)

    out = jax.block_until_ready(
        decoder_block(x, enc, src_mask, tgt_mask, params, num_heads=H))

    with jax.default_matmul_precision("highest"):
        ref = reference_decoder_block(x, enc, src_mask, tgt_mask, params, num_heads=H)

    assert out.shape == (B, S_TGT, D)
    err = float(jnp.max(jnp.abs(out - ref)))
    # tolerance loosened slightly for the approx (EUP) softmax reciprocal + MXU rounding
    assert jnp.allclose(out, ref, atol=1e-2, rtol=1e-2), f"max abs err = {err}"
    print("KERNEL_OK")
</pallas_src>

<mosaic_0001>
module attributes {stable_mosaic.version = 11 : i64} {
  func.func @_layernorm_kernel(%arg0: i32, %arg1: memref<16x32xf32, #tpu.memory_space<vmem>>, %arg2: memref<1x1xf32, #tpu.memory_space<vmem>>, %arg3: memref<1x1xf32, #tpu.memory_space<vmem>>, %arg4: memref<16x32xf32, #tpu.memory_space<vmem>>) attributes {dimension_semantics = [#tpu.dimension_semantics<parallel>], iteration_bounds = array<i64: 1>, scalar_prefetch = 0 : i64, scratch_operands = 0 : i64, tpu.core_type = #tpu.core_type<tc>, window_params = [{transform_indices = @transform_0, window_bounds = array<i64: 16, 32>}, {pipeline_mode = #tpu.pipeline_mode<synchronous>, transform_indices = @transform_1, window_bounds = array<i64: 1, 1>}, {pipeline_mode = #tpu.pipeline_mode<synchronous>, transform_indices = @transform_2, window_bounds = array<i64: 1, 1>}, {transform_indices = @transform_3, window_bounds = array<i64: 16, 32>}]} {
    %c0 = arith.constant 0 : index
    %c0_0 = arith.constant 0 : index
    %0 = vector.load %arg1[%c0, %c0_0] : memref<16x32xf32, #tpu.memory_space<vmem>>, vector<16x32xf32>
    %cst = arith.constant dense<0.000000e+00> : vector<16xf32>
    %1 = vector.multi_reduction <add>, %0, %cst [1] : vector<16x32xf32> to vector<16xf32>
    %2 = vector.shape_cast %1 : vector<16xf32> to vector<16x1xf32>
    %cst_1 = arith.constant 3.200000e+01 : f32
    %3 = vector.broadcast %cst_1 : f32 to vector<16x1xf32>
    %4 = arith.divf %2, %3 : vector<16x1xf32>
    %5 = vector.broadcast %4 : vector<16x1xf32> to vector<16x32xf32>
    %6 = arith.subf %0, %5 : vector<16x32xf32>
    %7 = arith.mulf %6, %6 : vector<16x32xf32>
    %cst_2 = arith.constant dense<0.000000e+00> : vector<16xf32>
    %8 = vector.multi_reduction <add>, %7, %cst_2 [1] : vector<16x32xf32> to vector<16xf32>
    %9 = vector.shape_cast %8 : vector<16xf32> to vector<16x1xf32>
    %cst_3 = arith.constant 3.100000e+01 : f32
    %10 = vector.broadcast %cst_3 : f32 to vector<16x1xf32>
    %11 = arith.divf %9, %10 : vector<16x1xf32>
    %12 = math.sqrt %11 : vector<16x1xf32>
    %c0_4 = arith.constant 0 : index
    %c0_5 = arith.constant 0 : index
    %13 = vector.load %arg2[%c0_4, %c0_5] : memref<1x1xf32, #tpu.memory_space<vmem>>, vector<1x1xf32>
    %14 = vector.broadcast %13 : vector<1x1xf32> to vector<16x32xf32>
    %15 = arith.mulf %14, %6 : vector<16x32xf32>
    %cst_6 = arith.constant 9.99999997E-7 : f32
    %16 = vector.broadcast %cst_6 : f32 to vector<16x1xf32>
    %17 = arith.addf %12, %16 : vector<16x1xf32>
    %18 = vector.broadcast %17 : vector<16x1xf32> to vector<16x32xf32>
    %19 = arith.divf %15, %18 : vector<16x32xf32>
    %c0_7 = arith.constant 0 : index
    %c0_8 = arith.constant 0 : index
    %20 = vector.load %arg3[%c0_7, %c0_8] : memref<1x1xf32, #tpu.memory_space<vmem>>, vector<1x1xf32>
    %21 = vector.broadcast %20 : vector<1x1xf32> to vector<16x32xf32>
    %22 = arith.addf %19, %21 : vector<16x32xf32>
    %c0_9 = arith.constant 0 : index
    %c0_10 = arith.constant 0 : index
    %23 = vector.load %arg4[%c0_9, %c0_10] : memref<16x32xf32, #tpu.memory_space<vmem>>, vector<16x32xf32>
    tpu.vector_store %arg4[%c0_9, %c0_10], %22 {strides = array<i32>} : memref<16x32xf32, #tpu.memory_space<vmem>>, vector<16x32xf32>,
    return
  }
  func.func @transform_0(%arg0: i32) -> (i32, i32) {
    %c0_i32 = arith.constant 0 : i32
    %c0_i32_0 = arith.constant 0 : i32
    return %arg0, %c0_i32 : i32, i32
  }
  func.func @transform_1(%arg0: i32) -> (i32, i32) {
    %c0_i32 = arith.constant 0 : i32
    %c0_i32_0 = arith.constant 0 : i32
    %c0_i32_1 = arith.constant 0 : i32
    return %c0_i32, %c0_i32_0 : i32, i32
  }
  func.func @transform_2(%arg0: i32) -> (i32, i32) {
    %c0_i32 = arith.constant 0 : i32
    %c0_i32_0 = arith.constant 0 : i32
    %c0_i32_1 = arith.constant 0 : i32
    return %c0_i32, %c0_i32_0 : i32, i32
  }
  func.func @transform_3(%arg0: i32) -> (i32, i32) {
    %c0_i32 = arith.constant 0 : i32
    %c0_i32_0 = arith.constant 0 : i32
    return %arg0, %c0_i32 : i32, i32
  }
}

</mosaic_0001>

<llo_original>
// kernel: tpu_custom_call.1
$region0: #{tpu_custom_call.1}
  #allocation0 [shape = 'u32[]', space=smem, size = 0x4, offset = 0x4, fixed_abs, tag = 'smem constant byte address 0x4 - core index']
  #allocation1 [shape = 'u32[72,128]{1,0:T(1,128)}', space=vmem, size = 0x9000, scoped, tag = 'internal scratch']
  #allocation2 [shape = 'f32[1,1]{1,0:T(1,128)S(1)}', space=vmem, size = 0x200, scoped, tag = 'scoped memory for tpu_custom_call.1']
  #allocation3 [shape = 'f32[1,1]{1,0:T(1,128)S(1)}', space=vmem, size = 0x200, scoped, tag = 'scoped memory for tpu_custom_call.1']
  %s0 = inlined_call_operand.hbm [shape: f32[16,32], index: 0, kind: input, shape index: {}]
  %s1 = inlined_call_operand.<no memory space> [shape: f32[1,1], index: 1, kind: input, shape index: {}]
  %s2 = inlined_call_operand.<no memory space> [shape: f32[1,1], index: 2, kind: input, shape index: {}]
  %s3 = inlined_call_operand.hbm [shape: f32[16,32], index: 3, kind: output, shape index: {}]
  %s4 = sld [smem:[#allocation0]]
  $region26: #{tpu_custom_call.1} parent=0
    _
  %s6 = ssub.s32 1, %s4
  %s7 = scalar_select 0, %s6, %s4
  %v8 = vstv %s1
  %9 = vst [vmem:[#allocation2] sm:$0x1] %v8
  %v10 = vstv %s2
  %11 = vst [vmem:[#allocation3] sm:$0x1] %v10
  $region1: #{tpu_custom_call.1} parent=0
    #allocation4 [shape = 'u8[8192]{0}', space=vmem, size = 0x2000, scoped, tag = 'input window, operand 0, single buffered']
    #allocation5 [shape = 's32[1]{0}', space=sflag, size = 0x4, scoped, tag = 'scoped memory for tpu_custom_call.1']
    #allocation6 [shape = 's32[1]{0}', space=sflag, size = 0x4, scoped, tag = 'scoped memory for tpu_custom_call.1']
    #allocation7 [shape = 'u8[8192]{0}', space=vmem, size = 0x2000, scoped, tag = 'output window, operand 0, single buffered']
    %12 = vsyncpa [#allocation5], 0
    %13 = vsyncpa [#allocation6], 0
    // Predicated region
    $region2: #{tpu_custom_call.1} parent=1 // pred_check
      _
    $region3: #{tpu_custom_call.1} parent=1 // pred_check_branch
      %15 = sbr.rel (0) target = $region5
    $region4: #{tpu_custom_call.1} parent=1 // pred_region
      %17 = vsyncadd [#allocation5], 0
      %s18 = sshll.u32 %s0, 4
      %s19 = int_to_ptr.hbm [resolvable:$true] %s18
      %s20 = sshll.u32 [#allocation4], 4
      %s21 = int_to_ptr.vmem [resolvable:$true] %s20
      %26 = dma.hbm_to_vmem [thread:$0]  %s19, 256, %s21, [#allocation5], 128, 128, 8
    $region5: #{tpu_custom_call.1} parent=1 // pred_fallthru
      _
    // Predicated region
    $region6: #{tpu_custom_call.1} parent=1 // pred_check
      _
    $region7: #{tpu_custom_call.1} parent=1 // pred_check_branch
      %28 = sbr.rel (0) target = $region9
    $region8: #{tpu_custom_call.1} parent=1 // pred_region
      _
    $region9: #{tpu_custom_call.1} parent=1 // pred_fallthru
      _
    // Predicated region
    $region10: #{tpu_custom_call.1} parent=1 // pred_check
      _
    $region11: #{tpu_custom_call.1} parent=1 // pred_check_branch
      %30 = sbr.rel (0) target = $region13
    $region12: #{tpu_custom_call.1} parent=1 // pred_region
      _
    $region13: #{tpu_custom_call.1} parent=1 // pred_fallthru
      _
    // Predicated region
    $region14: #{tpu_custom_call.1} parent=1 // pred_check
      _
    $region15: #{tpu_custom_call.1} parent=1 // pred_check_branch
      %32 = sbr.rel (0) target = $region17
    $region16: #{tpu_custom_call.1} parent=1 // pred_region
      %34 = dma.done [#allocation5], 256
    $region17: #{tpu_custom_call.1} parent=1 // pred_fallthru
      _
    %v35 = vld [vmem:[#allocation4] sm:$0xff]
    %v36 = vld [vmem:[#allocation4 + $0x8] sm:$0xff]
    %vm37 = vcmask 261120
    %v38 = vsel %vm37, %v35, 0.0
    %39 = vadd.xlane.f32.xlu0 %v38
    %v40 = vpop.xlane.xlu0 %39
    %v41 = vsel %vm37, %v36, 0.0
    %42 = vadd.xlane.f32.xlu0 %v41
    %v43 = vpop.xlane.xlu0 %42
    %v44 = vrcp.pop 32.0
    %v45 = vmul.f32 32.0, %v44
    %v46 = vsub.f32 1.0, %v45
    %v47 = vmul.f32 %v44, %v46
    %v48 = vadd.f32 %v44, %v47
    %vm49 = vweird.f32 %v44
    %v50 = vsel %vm49, %v44, %v48
    %v51 = vmul.f32 %v40, %v50
    %v52 = vmul.f32 %v43, %v50
    %v53 = vsub.f32 %v35, %v51
    %v54 = vsub.f32 %v36, %v52
    %v55 = vmul.f32 %v53, %v53
    %v56 = vmul.f32 %v54, %v54
    %v57 = vsel %vm37, %v55, 0.0
    %58 = vadd.xlane.f32.xlu0 %v57
    %v59 = vpop.xlane.xlu0 %58
    %v60 = vsel %vm37, %v56, 0.0
    %61 = vadd.xlane.f32.xlu0 %v60
    %v62 = vpop.xlane.xlu0 %61
    %v63 = vrcp.pop 31.0
    %v64 = vmul.f32 31.0, %v63
    %v65 = vsub.f32 1.0, %v64
    %v66 = vmul.f32 %v63, %v65
    %v67 = vadd.f32 %v63, %v66
    %vm68 = vweird.f32 %v63
    %v69 = vsel %vm68, %v63, %v67
    %v70 = vmul.f32 %v59, %v69
    %v71 = vmul.f32 %v62, %v69
    %v72 = vrsqrt.pop %v70
    %v73 = vmul.f32 %v72, %v70
    %v74 = vmul.f32 %v73, %v72
    %v75 = vmul.f32 0.5, %v74
    %v76 = vsub.f32 1.5, %v75
    %v77 = vmul.f32 %v72, %v76
    %v78 = vmul.f32 %v70, %v77
    %vm79 = vcmp.eq.f32.partialorder %v70, inf
    %v80 = vsel %vm79, %v70, %v78
    %vm81 = vcmp.eq.f32.partialorder %v70, 0.0
    %v82 = vand.u32 %v70, 2147483648
    %v83 = vsel %vm81, %v82, %v80
    %v84 = vrsqrt.pop %v71
    %v85 = vmul.f32 %v84, %v71
    %v86 = vmul.f32 %v85, %v84
    %v87 = vmul.f32 0.5, %v86
    %v88 = vsub.f32 1.5, %v87
    %v89 = vmul.f32 %v84, %v88
    %v90 = vmul.f32 %v71, %v89
    %vm91 = vcmp.eq.f32.partialorder %v71, inf
    %v92 = vsel %vm91, %v71, %v90
    %vm93 = vcmp.eq.f32.partialorder %v71, 0.0
    %v94 = vand.u32 %v71, 2147483648
    %v95 = vsel %vm93, %v94, %v92
    %v96 = vld [vmem:[#allocation2] sm:$0x1]
    %v98 = vperm.slane %v96, 0
    %99 = vset.pattern.permute.xlu0 0
    %100 = vperm.xlu0 %99, %v98
    %v101 = vpop.permute.xlu0 %100
    %v103 = vmul.f32 %v101, %v53
    %v104 = vmul.f32 %v101, %v54
    %v105 = vadd.f32 %v83, 1e-06
    %v106 = vadd.f32 %v95, 1e-06
    %v107 = vrcp.pop %v105
    %v108 = vmul.f32 %v105, %v107
    %v109 = vsub.f32 1.0, %v108
    %v110 = vmul.f32 %v107, %v109
    %v111 = vadd.f32 %v107, %v110
    %vm112 = vweird.f32 %v105
    %vm113 = vweird.f32 %v107
    %vm114 = vmor %vm112, %vm113
    %v115 = vsel %vm114, %v107, %v111
    %v116 = vand.u32 2147483647, %v105
    %vm117 = vcmp.eq.f32.partialorder %v116, 8.507059e+37
    %v118 = vand.u32 %v105, 2147483648
    %v119 = vor.u32 1.1754944e-38, %v118
    %v120 = vsel %vm117, %v119, %v115
    %v121 = vmul.f32 %v103, %v120
    %v122 = vrcp.pop %v106
    %v123 = vmul.f32 %v106, %v122
    %v124 = vsub.f32 1.0, %v123
    %v125 = vmul.f32 %v122, %v124
    %v126 = vadd.f32 %v122, %v125
    %vm127 = vweird.f32 %v106
    %vm128 = vweird.f32 %v122
    %vm129 = vmor %vm127, %vm128
    %v130 = vsel %vm129, %v122, %v126
    %v131 = vand.u32 2147483647, %v106
    %vm132 = vcmp.eq.f32.partialorder %v131, 8.507059e+37
    %v133 = vand.u32 %v106, 2147483648
    %v134 = vor.u32 1.1754944e-38, %v133
    %v135 = vsel %vm132, %v134, %v130
    %v136 = vmul.f32 %v104, %v135
    %v137 = vld [vmem:[#allocation3] sm:$0x1]
    %v139 = vperm.slane %v137, 0
    %140 = vset.pattern.permute.xlu0 0
    %141 = vperm.xlu0 %140, %v139
    %v142 = vpop.permute.xlu0 %141
    %v144 = vadd.f32 %v121, %v142
    %v145 = vadd.f32 %v136, %v142
    %146 = vst.msk [vmem:[#allocation7] sm:$0xff] %vm37, %v144
    %147 = vst.msk [vmem:[#allocation7 + $0x8] sm:$0xff] %vm37, %v145
    // Predicated region
    $region18: #{tpu_custom_call.1} parent=1 // pred_check
      _
    $region19: #{tpu_custom_call.1} parent=1 // pred_check_branch
      %149 = sbr.rel (0) target = $region21
    $region20: #{tpu_custom_call.1} parent=1 // pred_region
      %151 = vsyncadd [#allocation6], 0
      %s152 = sshll.u32 [#allocation7], 4
      %s153 = int_to_ptr.vmem [resolvable:$true] %s152
      %s154 = sshll.u32 %s3, 4
      %s155 = int_to_ptr.hbm [resolvable:$true] %s154
      %160 = dma.vmem_to_hbm [thread:$0]  %s153, 256, %s155, [#allocation6], 128, 128, 8
    $region21: #{tpu_custom_call.1} parent=1 // pred_fallthru
      _
    // Predicated region
    $region22: #{tpu_custom_call.1} parent=1 // pred_check
      _
    $region23: #{tpu_custom_call.1} parent=1 // pred_check_branch
      %162 = sbr.rel (0) target = $region25
    $region24: #{tpu_custom_call.1} parent=1 // pred_region
      %164 = dma.done [#allocation6], 256
    $region25: #{tpu_custom_call.1} parent=1 // pred_fallthru
      _
    %165 = vsyncpa [#allocation5], 1
    %166 = vsyncpa [#allocation6], 1

</llo_original>
